<compile_context>
chip_gen: v5e
topology: v5e:2x2
jax: 0.10.0
libtpu: 0.0.40
codegen_flags: <defaults>
</compile_context>

<pallas_src>
import jax
import jax.numpy as jnp
from jax import lax
from jax.experimental import pallas as pl
from jax.experimental.pallas import tpu as pltpu


def _make_csf_kernel(*, group, hw_true, hw_tile, bn_count, ragged, eps=1e-5):
    G = group
    inv_hw = 1.0 / float(hw_true)     # true (unpadded) spatial size
    inv_n = 1.0 / float(bn_count)     # B * H * W (true)

    # packed index for the upper-triangular cross-product accumulator
    pair_idx = {}
    k = 0
    for g in range(G):
        for h in range(g, G):
            pair_idx[(g, h)] = k
            k += 1

    def kernel(x_ref, w1_ref, b1_ref, w2_ref, b2_ref, gamma_ref, beta_ref,
               out_ref, s_acc, p_acc, attn_sc, scale_sc, shift_sc):
        # x_ref: (G, B, C, hw_tile)      w1_ref: (C, Cr)    b1_ref: (1, Cr)
        # w2_ref: (Cr, G*C)              b2_ref: (1, G*C)
        # gamma_ref / beta_ref: (1, C)   out_ref: (B, C, hw_tile)
        p = pl.program_id(0)
        t = pl.program_id(1)
        last_t = pl.num_programs(1) - 1
        C = x_ref.shape[2]

        # ------------- pass 0: sufficient statistics + attention + BN fold ------
        @pl.when(p == 0)
        def _stats_pass():
            @pl.when(t == 0)
            def _():
                s_acc[...] = jnp.zeros_like(s_acc)
                p_acc[...] = jnp.zeros_like(p_acc)

            if ragged:
                # Mask the out-of-bounds lanes of the (partial) last tile so they
                # contribute nothing to the pooled / BN sums.
                pos = t * hw_tile + lax.broadcasted_iota(
                    jnp.int32, (1, 1, hw_tile), 2)
                lane_ok = pos < hw_true
                xg = [jnp.where(lane_ok, x_ref[g].astype(jnp.float32), 0.0)
                      for g in range(G)]
            else:
                xg = [x_ref[g].astype(jnp.float32) for g in range(G)]

            for g in range(G):
                s_acc[g] += jnp.sum(xg[g], axis=-1)                     # (B, C)
            for g in range(G):
                for h in range(g, G):
                    p_acc[pair_idx[(g, h)]] += jnp.sum(xg[g] * xg[h], axis=-1)

            @pl.when(t == last_t)
            def _finalize():
                # ---- squeeze MLP + group softmax (attention weights) ----
                pooled = s_acc[0]
                for g in range(1, G):
                    pooled = pooled + s_acc[g]
                pooled = pooled * inv_hw                                # (B, C)
                hidden = jnp.dot(pooled, w1_ref[...],
                                 preferred_element_type=jnp.float32)
                hidden = jnp.maximum(hidden + b1_ref[...], 0.0)         # (B, Cr)
                # One fused MXU matmul for all groups (group-major columns).
                logits = jnp.dot(hidden, w2_ref[...],
                                 preferred_element_type=jnp.float32) + b2_ref[...]
                per_g = [logits[:, g * C:(g + 1) * C] for g in range(G)]
                m = per_g[0]
                for g in range(1, G):
                    m = jnp.maximum(m, per_g[g])
                exps = [jnp.exp(l - m) for l in per_g]
                denom = exps[0]
                for g in range(1, G):
                    denom = denom + exps[g]
                # EUP approx reciprocal + one Newton step -> full f32 accuracy.
                inv = pl.reciprocal(denom, approx=True)
                inv = inv * (2.0 - denom * inv)
                attn = [e * inv for e in exps]                          # (B, C)
                for g in range(G):
                    # one-time relayout: C on the sublane axis so pass-1
                    # broadcasts are cheap lane splats
                    attn_sc[g] = attn[g][:, :, None]                    # (B, C, 1)

                # ---- BN batch statistics from the sufficient statistics ----
                # TODO(synk): SyncBatchNorm cross-device stat all-reduce; single
                # device => plain training-mode batch stats (biased variance).
                mean_bc = attn[0] * s_acc[0]
                for g in range(1, G):
                    mean_bc = mean_bc + attn[g] * s_acc[g]
                ex2_bc = None
                for g in range(G):
                    for h in range(g, G):
                        w = 1.0 if g == h else 2.0
                        term = (w * attn[g] * attn[h]) * p_acc[pair_idx[(g, h)]]
                        ex2_bc = term if ex2_bc is None else ex2_bc + term
                mean = jnp.sum(mean_bc, axis=0, keepdims=True) * inv_n  # (1, C)
                ex2 = jnp.sum(ex2_bc, axis=0, keepdims=True) * inv_n    # (1, C)
                # TODO(synk): E[x^2]-mean^2 in f32 cancels when |mean|>>std; a
                # centered extra stream would be safer but costs G more reads.
                var = jnp.maximum(ex2 - mean * mean, 0.0)
                scale = gamma_ref[...] * lax.rsqrt(var + eps)           # (1, C)
                scale_sc[...] = scale[:, :, None]                       # (1, C, 1)
                shift_sc[...] = (beta_ref[...] - mean * scale)[:, :, None]

        # ------------- pass 1: fuse, apply folded BN, write output --------------
        @pl.when(p == 1)
        def _write_pass():
            acc = x_ref[0].astype(jnp.float32) * attn_sc[0]             # lane splat
            for g in range(1, G):
                acc = acc + x_ref[g].astype(jnp.float32) * attn_sc[g]
            out = acc * scale_sc[...] + shift_sc[...]
            out_ref[...] = out.astype(out_ref.dtype)

    return kernel


def channel_selective_fusion(x_groups, params, *, group=2, ratio=4, eps=1e-5):
    """x_groups: (G, B, C, H, W) float32; returns (B, C, H, W)."""
    w1, b1, w2, b2, gamma, beta = params
    G, B, C, H, W = x_groups.shape
    assert G == group
    Cr = C // ratio
    HW = H * W
    LANE = 128
    NUM_PASSES = 2

    # ---- VMEM-budget-driven spatial tile (multiple of 128 lanes) ----
    try:
        vmem_cap = int(pltpu.get_tpu_info().vmem_capacity_bytes)
    except Exception:
        vmem_cap = 64 * 2 ** 20          # conservative fallback (works on v7x too)
    budget = int(vmem_cap * 0.70)
    # f32 bytes per lane-column: x double-buffered (2G) + out double-buffered (2)
    # + x_out / intermediate temporaries (~4 headroom)
    bytes_per_col = 4 * B * C * (2 * G + 6)
    hw_cap = max(LANE, (budget // max(bytes_per_col, 1)) // LANE * LANE)
    hw_tile = int(min(hw_cap, 2048, -(-HW // LANE) * LANE))
    num_tiles = -(-HW // hw_tile)
    HW_pad = num_tiles * hw_tile
    ragged = (HW_pad != HW)

    # No input padding: the input is streamed unpadded; a partial last block is
    # masked in-kernel.  Only the output is over-allocated and sliced afterwards.
    x_flat = x_groups.reshape(G, B, C, HW)

    # torch.nn.Linear stores weight as (out, in): y = x @ W.T + b.
    w1_t = jnp.transpose(w1)                                        # (C, Cr)
    b1_r = b1.reshape(1, Cr)
    # attention layer output index j = c*G + g (from .view(-1, C, G)); regroup to
    # group-major columns so logits[:, g*C:(g+1)*C] is group g -> one fused matmul.
    w2_f = jnp.transpose(
        jnp.transpose(w2.reshape(C, G, Cr), (1, 0, 2)).reshape(G * C, Cr))  # (Cr, G*C)
    b2_f = jnp.transpose(b2.reshape(C, G), (1, 0)).reshape(1, G * C)
    gamma_r = gamma.reshape(1, C)
    beta_r = beta.reshape(1, C)

    kernel = _make_csf_kernel(group=G, hw_true=HW, hw_tile=hw_tile,
                              bn_count=B * HW, ragged=ragged, eps=eps)

    x_spec = pl.BlockSpec((G, B, C, hw_tile), lambda p, t: (0, 0, 0, t))

    def _full(shape):
        nd = len(shape)
        return pl.BlockSpec(shape, lambda p, t: (0,) * nd)

    # During the stats pass the output block stays parked on tile 0 (never
    # written by the kernel); in the write pass it walks the tiles.
    out_spec = pl.BlockSpec((B, C, hw_tile), lambda p, t: (0, 0, t * p))

    elems = B * C * HW
    cost = pl.CostEstimate(
        flops=int((G * G + 4 * G + 2) * elems),
        transcendentals=int((G + 1) * B * C + C),
        bytes_accessed=int(4 * (2 * G + 1) * elems),
    )
    vmem_need = (4 * B * C * hw_tile * (2 * G + 2 + 2)
                 + 4 * B * C * (3 * G + G * (G + 1) // 2 + 4)
                 + (2 << 20))
    vmem_limit = int(min(max(vmem_need, 32 * 2 ** 20), int(vmem_cap * 0.9)))

    out_flat = pl.pallas_call(
        kernel,
        out_shape=jax.ShapeDtypeStruct((B, C, HW_pad), x_groups.dtype),
        grid=(NUM_PASSES, num_tiles),
        in_specs=[
            x_spec,
            _full((C, Cr)), _full((1, Cr)),
            _full((Cr, G * C)), _full((1, G * C)),
            _full((1, C)), _full((1, C)),
        ],
        out_specs=out_spec,
        scratch_shapes=[
            pltpu.VMEM((G, B, C), jnp.float32),                   # group sums S_g
            pltpu.VMEM((G * (G + 1) // 2, B, C), jnp.float32),    # cross prods P_gg'
            pltpu.VMEM((G, B, C, 1), jnp.float32),                # attention (sublane-C)
            pltpu.VMEM((1, C, 1), jnp.float32),                   # folded BN scale
            pltpu.VMEM((1, C, 1), jnp.float32),                   # folded BN shift
        ],
        compiler_params=pltpu.CompilerParams(
            # Both axes carry cross-step scratch accumulation -> must be arbitrary.
            # TODO(synk): v7x megacore split (per-core partial stats + reduction).
            dimension_semantics=("arbitrary", "arbitrary"),
            vmem_limit_bytes=vmem_limit,
        ),
        cost_estimate=cost,
    )(x_flat, w1_t, b1_r, w2_f, b2_f, gamma_r, beta_r)

    return out_flat[:, :, :HW].reshape(B, C, H, W)


def reference(x_groups, params, *, group=2, ratio=4):
    """Pure-JAX reference mirroring the PyTorch forward (module in train mode)."""
    w1, b1, w2, b2, gamma, beta = params
    G, B, C, H, W = x_groups.shape
    x_fuse = jnp.sum(x_groups, axis=0)                     # (B, C, H, W)
    pooled = jnp.mean(x_fuse, axis=(2, 3))                 # (B, C)  GlobalAvgPool2d
    hidden = jax.nn.relu(pooled @ w1.T + b1)               # (B, Cr)
    logits = (hidden @ w2.T + b2).reshape(B, C, G)
    attn = jax.nn.softmax(logits, axis=2)                  # (B, C, G)
    x_out = jnp.zeros_like(x_fuse)
    for g in range(G):
        x_out = x_out + x_groups[g] * attn[:, :, g][:, :, None, None]
    mean = jnp.mean(x_out, axis=(0, 2, 3), keepdims=True)
    var = jnp.mean((x_out - mean) ** 2, axis=(0, 2, 3), keepdims=True)
    out = (x_out - mean) / jnp.sqrt(var + 1e-5)
    return out * gamma[None, :, None, None] + beta[None, :, None, None]


def init_params(key, channel_in, group=2, ratio=4):
    """Deterministic parameter init with PyTorch Linear-style uniform bounds."""
    C, Cr = channel_in, channel_in // ratio
    k1, k2, k3, k4 = jax.random.split(key, 4)
    bnd1 = 1.0 / jnp.sqrt(C)
    bnd2 = 1.0 / jnp.sqrt(Cr)
    w1 = jax.random.uniform(k1, (Cr, C), jnp.float32, -bnd1, bnd1)          # reduce
    b1 = jax.random.uniform(k2, (Cr,), jnp.float32, -bnd1, bnd1)
    w2 = jax.random.uniform(k3, (C * group, Cr), jnp.float32, -bnd2, bnd2)  # attention
    b2 = jax.random.uniform(k4, (C * group,), jnp.float32, -bnd2, bnd2)
    gamma = jnp.ones((C,), jnp.float32)                                     # BN weight
    beta = jnp.zeros((C,), jnp.float32)                                     # BN bias
    return (w1, b1, w2, b2, gamma, beta)


if __name__ == "__main__":
    GROUP, RATIO = 2, 4
    B, C, H, W = 2, 8, 16, 16

    key = jax.random.PRNGKey(0)
    kx, kp = jax.random.split(key)
    x = jax.random.normal(kx, (GROUP, B, C, H, W), jnp.float32)  # stacked list-of-groups
    params = init_params(kp, C, GROUP, RATIO)

    out = jax.block_until_ready(
        channel_selective_fusion(x, params, group=GROUP, ratio=RATIO))
    ref = jax.block_until_ready(reference(x, params, group=GROUP, ratio=RATIO))

    err = float(jnp.max(jnp.abs(out - ref)))
    assert out.shape == (B, C, H, W), out.shape
    assert err < 5e-4, f"mismatch vs reference: max abs err = {err}"

    print("KERNEL_OK")
</pallas_src>

<mosaic_0001>
module attributes {stable_mosaic.version = 11 : i64} {
  func.func @kernel(%arg0: i32, %arg1: i32, %arg2: memref<2x2x8x256xf32, #tpu.memory_space<vmem>>, %arg3: memref<8x2xf32, #tpu.memory_space<vmem>>, %arg4: memref<1x2xf32, #tpu.memory_space<vmem>>, %arg5: memref<2x16xf32, #tpu.memory_space<vmem>>, %arg6: memref<1x16xf32, #tpu.memory_space<vmem>>, %arg7: memref<1x8xf32, #tpu.memory_space<vmem>>, %arg8: memref<1x8xf32, #tpu.memory_space<vmem>>, %arg9: memref<2x8x256xf32, #tpu.memory_space<vmem>>, %arg10: memref<2x2x8xf32, #tpu.memory_space<vmem>>, %arg11: memref<3x2x8xf32, #tpu.memory_space<vmem>>, %arg12: memref<2x2x8x1xf32, #tpu.memory_space<vmem>>, %arg13: memref<1x8x1xf32, #tpu.memory_space<vmem>>, %arg14: memref<1x8x1xf32, #tpu.memory_space<vmem>>) attributes {dimension_semantics = [#tpu.dimension_semantics<arbitrary>, #tpu.dimension_semantics<arbitrary>], iteration_bounds = array<i64: 2, 1>, scalar_prefetch = 0 : i64, scratch_operands = 5 : i64, tpu.core_type = #tpu.core_type<tc>, window_params = [{transform_indices = @transform_0, window_bounds = array<i64: 2, 2, 8, 256>}, {pipeline_mode = #tpu.pipeline_mode<synchronous>, transform_indices = @transform_1, window_bounds = array<i64: 8, 2>}, {pipeline_mode = #tpu.pipeline_mode<synchronous>, transform_indices = @transform_2, window_bounds = array<i64: 1, 2>}, {pipeline_mode = #tpu.pipeline_mode<synchronous>, transform_indices = @transform_3, window_bounds = array<i64: 2, 16>}, {pipeline_mode = #tpu.pipeline_mode<synchronous>, transform_indices = @transform_4, window_bounds = array<i64: 1, 16>}, {pipeline_mode = #tpu.pipeline_mode<synchronous>, transform_indices = @transform_5, window_bounds = array<i64: 1, 8>}, {pipeline_mode = #tpu.pipeline_mode<synchronous>, transform_indices = @transform_6, window_bounds = array<i64: 1, 8>}, {transform_indices = @transform_7, window_bounds = array<i64: 2, 8, 256>}]} {
    %c0_i32 = arith.constant 0 : i32
    %0 = arith.cmpi eq, %arg0, %c0_i32 : i32
    %1 = arith.extui %0 : i1 to i32
    %c0_i32_0 = arith.constant 0 : i32
    %2 = arith.cmpi ne, %1, %c0_i32_0 : i32
    scf.if %2 {
      %c0_i32_2 = arith.constant 0 : i32
      %6 = arith.cmpi eq, %arg1, %c0_i32_2 : i32
      %7 = arith.extui %6 : i1 to i32
      %c0_i32_3 = arith.constant 0 : i32
      %8 = arith.cmpi ne, %7, %c0_i32_3 : i32
      scf.if %8 {
        %cst_45 = arith.constant 0.000000e+00 : f32
        %54 = vector.broadcast %cst_45 : f32 to vector<2x2x8xf32>
        %c0_46 = arith.constant 0 : index
        %c0_47 = arith.constant 0 : index
        %c0_48 = arith.constant 0 : index
        %55 = vector.load %arg10[%c0_46, %c0_47, %c0_48] : memref<2x2x8xf32, #tpu.memory_space<vmem>>, vector<2x2x8xf32>
        tpu.vector_store %arg10[%c0_46, %c0_47, %c0_48], %54 {strides = array<i32>} : memref<2x2x8xf32, #tpu.memory_space<vmem>>, vector<2x2x8xf32>,
        %cst_49 = arith.constant 0.000000e+00 : f32
        %56 = vector.broadcast %cst_49 : f32 to vector<3x2x8xf32>
        %c0_50 = arith.constant 0 : index
        %c0_51 = arith.constant 0 : index
        %c0_52 = arith.constant 0 : index
        %57 = vector.load %arg11[%c0_50, %c0_51, %c0_52] : memref<3x2x8xf32, #tpu.memory_space<vmem>>, vector<3x2x8xf32>
        tpu.vector_store %arg11[%c0_50, %c0_51, %c0_52], %56 {strides = array<i32>} : memref<3x2x8xf32, #tpu.memory_space<vmem>>, vector<3x2x8xf32>,
      } else {
      }
      %c0 = arith.constant 0 : index
      %c0_4 = arith.constant 0 : index
      %c0_5 = arith.constant 0 : index
      %c0_6 = arith.constant 0 : index
      %9 = vector.load %arg2[%c0, %c0_4, %c0_5, %c0_6] : memref<2x2x8x256xf32, #tpu.memory_space<vmem>>, vector<1x2x8x256xf32>
      %10 = vector.shape_cast %9 : vector<1x2x8x256xf32> to vector<2x8x256xf32>
      %c1 = arith.constant 1 : index
      %c0_7 = arith.constant 0 : index
      %c0_8 = arith.constant 0 : index
      %c0_9 = arith.constant 0 : index
      %11 = vector.load %arg2[%c1, %c0_7, %c0_8, %c0_9] : memref<2x2x8x256xf32, #tpu.memory_space<vmem>>, vector<1x2x8x256xf32>
      %12 = vector.shape_cast %11 : vector<1x2x8x256xf32> to vector<2x8x256xf32>
      %c0_10 = arith.constant 0 : index
      %c0_11 = arith.constant 0 : index
      %c0_12 = arith.constant 0 : index
      %13 = vector.load %arg10[%c0_10, %c0_11, %c0_12] : memref<2x2x8xf32, #tpu.memory_space<vmem>>, vector<1x2x8xf32>
      %14 = vector.shape_cast %13 : vector<1x2x8xf32> to vector<2x8xf32>
      %cst = arith.constant dense<0.000000e+00> : vector<2x8xf32>
      %15 = vector.multi_reduction <add>, %10, %cst [2] : vector<2x8x256xf32> to vector<2x8xf32>
      %16 = arith.addf %14, %15 : vector<2x8xf32>
      %c0_13 = arith.constant 0 : index
      %c0_14 = arith.constant 0 : index
      %c0_15 = arith.constant 0 : index
      %17 = vector.load %arg10[%c0_13, %c0_14, %c0_15] : memref<2x2x8xf32, #tpu.memory_space<vmem>>, vector<1x2x8xf32>
      %18 = vector.shape_cast %17 : vector<1x2x8xf32> to vector<2x8xf32>
      %19 = vector.shape_cast %16 : vector<2x8xf32> to vector<1x2x8xf32>
      tpu.vector_store %arg10[%c0_13, %c0_14, %c0_15], %19 {strides = array<i32>} : memref<2x2x8xf32, #tpu.memory_space<vmem>>, vector<1x2x8xf32>,
      %c1_16 = arith.constant 1 : index
      %c0_17 = arith.constant 0 : index
      %c0_18 = arith.constant 0 : index
      %20 = vector.load %arg10[%c1_16, %c0_17, %c0_18] : memref<2x2x8xf32, #tpu.memory_space<vmem>>, vector<1x2x8xf32>
      %21 = vector.shape_cast %20 : vector<1x2x8xf32> to vector<2x8xf32>
      %cst_19 = arith.constant dense<0.000000e+00> : vector<2x8xf32>
      %22 = vector.multi_reduction <add>, %12, %cst_19 [2] : vector<2x8x256xf32> to vector<2x8xf32>
      %23 = arith.addf %21, %22 : vector<2x8xf32>
      %c1_20 = arith.constant 1 : index
      %c0_21 = arith.constant 0 : index
      %c0_22 = arith.constant 0 : index
      %24 = vector.load %arg10[%c1_20, %c0_21, %c0_22] : memref<2x2x8xf32, #tpu.memory_space<vmem>>, vector<1x2x8xf32>
      %25 = vector.shape_cast %24 : vector<1x2x8xf32> to vector<2x8xf32>
      %26 = vector.shape_cast %23 : vector<2x8xf32> to vector<1x2x8xf32>
      tpu.vector_store %arg10[%c1_20, %c0_21, %c0_22], %26 {strides = array<i32>} : memref<2x2x8xf32, #tpu.memory_space<vmem>>, vector<1x2x8xf32>,
      %c0_23 = arith.constant 0 : index
      %c0_24 = arith.constant 0 : index
      %c0_25 = arith.constant 0 : index
      %27 = vector.load %arg11[%c0_23, %c0_24, %c0_25] : memref<3x2x8xf32, #tpu.memory_space<vmem>>, vector<1x2x8xf32>
      %28 = vector.shape_cast %27 : vector<1x2x8xf32> to vector<2x8xf32>
      %29 = arith.mulf %10, %10 : vector<2x8x256xf32>
      %cst_26 = arith.constant dense<0.000000e+00> : vector<2x8xf32>
      %30 = vector.multi_reduction <add>, %29, %cst_26 [2] : vector<2x8x256xf32> to vector<2x8xf32>
      %31 = arith.addf %28, %30 : vector<2x8xf32>
      %c0_27 = arith.constant 0 : index
      %c0_28 = arith.constant 0 : index
      %c0_29 = arith.constant 0 : index
      %32 = vector.load %arg11[%c0_27, %c0_28, %c0_29] : memref<3x2x8xf32, #tpu.memory_space<vmem>>, vector<1x2x8xf32>
      %33 = vector.shape_cast %32 : vector<1x2x8xf32> to vector<2x8xf32>
      %34 = vector.shape_cast %31 : vector<2x8xf32> to vector<1x2x8xf32>
      tpu.vector_store %arg11[%c0_27, %c0_28, %c0_29], %34 {strides = array<i32>} : memref<3x2x8xf32, #tpu.memory_space<vmem>>, vector<1x2x8xf32>,
      %c1_30 = arith.constant 1 : index
      %c0_31 = arith.constant 0 : index
      %c0_32 = arith.constant 0 : index
      %35 = vector.load %arg11[%c1_30, %c0_31, %c0_32] : memref<3x2x8xf32, #tpu.memory_space<vmem>>, vector<1x2x8xf32>
      %36 = vector.shape_cast %35 : vector<1x2x8xf32> to vector<2x8xf32>
      %37 = arith.mulf %10, %12 : vector<2x8x256xf32>
      %cst_33 = arith.constant dense<0.000000e+00> : vector<2x8xf32>
      %38 = vector.multi_reduction <add>, %37, %cst_33 [2] : vector<2x8x256xf32> to vector<2x8xf32>
      %39 = arith.addf %36, %38 : vector<2x8xf32>
      %c1_34 = arith.constant 1 : index
      %c0_35 = arith.constant 0 : index
      %c0_36 = arith.constant 0 : index
      %40 = vector.load %arg11[%c1_34, %c0_35, %c0_36] : memref<3x2x8xf32, #tpu.memory_space<vmem>>, vector<1x2x8xf32>
      %41 = vector.shape_cast %40 : vector<1x2x8xf32> to vector<2x8xf32>
      %42 = vector.shape_cast %39 : vector<2x8xf32> to vector<1x2x8xf32>
      tpu.vector_store %arg11[%c1_34, %c0_35, %c0_36], %42 {strides = array<i32>} : memref<3x2x8xf32, #tpu.memory_space<vmem>>, vector<1x2x8xf32>,
      %c2 = arith.constant 2 : index
      %c0_37 = arith.constant 0 : index
      %c0_38 = arith.constant 0 : index
      %43 = vector.load %arg11[%c2, %c0_37, %c0_38] : memref<3x2x8xf32, #tpu.memory_space<vmem>>, vector<1x2x8xf32>
      %44 = vector.shape_cast %43 : vector<1x2x8xf32> to vector<2x8xf32>
      %45 = arith.mulf %12, %12 : vector<2x8x256xf32>
      %cst_39 = arith.constant dense<0.000000e+00> : vector<2x8xf32>
      %46 = vector.multi_reduction <add>, %45, %cst_39 [2] : vector<2x8x256xf32> to vector<2x8xf32>
      %47 = arith.addf %44, %46 : vector<2x8xf32>
      %c2_40 = arith.constant 2 : index
      %c0_41 = arith.constant 0 : index
      %c0_42 = arith.constant 0 : index
      %48 = vector.load %arg11[%c2_40, %c0_41, %c0_42] : memref<3x2x8xf32, #tpu.memory_space<vmem>>, vector<1x2x8xf32>
      %49 = vector.shape_cast %48 : vector<1x2x8xf32> to vector<2x8xf32>
      %50 = vector.shape_cast %47 : vector<2x8xf32> to vector<1x2x8xf32>
      tpu.vector_store %arg11[%c2_40, %c0_41, %c0_42], %50 {strides = array<i32>} : memref<3x2x8xf32, #tpu.memory_space<vmem>>, vector<1x2x8xf32>,
      %c0_i32_43 = arith.constant 0 : i32
      %51 = arith.cmpi eq, %arg1, %c0_i32_43 : i32
      %52 = arith.extui %51 : i1 to i32
      %c0_i32_44 = arith.constant 0 : i32
      %53 = arith.cmpi ne, %52, %c0_i32_44 : i32
      scf.if %53 {
        %c0_45 = arith.constant 0 : index
        %c0_46 = arith.constant 0 : index
        %c0_47 = arith.constant 0 : index
        %54 = vector.load %arg10[%c0_45, %c0_46, %c0_47] : memref<2x2x8xf32, #tpu.memory_space<vmem>>, vector<1x2x8xf32>
        %55 = vector.shape_cast %54 : vector<1x2x8xf32> to vector<2x8xf32>
        %c1_48 = arith.constant 1 : index
        %c0_49 = arith.constant 0 : index
        %c0_50 = arith.constant 0 : index
        %56 = vector.load %arg10[%c1_48, %c0_49, %c0_50] : memref<2x2x8xf32, #tpu.memory_space<vmem>>, vector<1x2x8xf32>
        %57 = vector.shape_cast %56 : vector<1x2x8xf32> to vector<2x8xf32>
        %58 = arith.addf %55, %57 : vector<2x8xf32>
        %cst_51 = arith.constant 3.906250e-03 : f32
        %59 = vector.broadcast %cst_51 : f32 to vector<2x8xf32>
        %60 = arith.mulf %58, %59 : vector<2x8xf32>
        %c0_52 = arith.constant 0 : index
        %c0_53 = arith.constant 0 : index
        %61 = vector.load %arg3[%c0_52, %c0_53] : memref<8x2xf32, #tpu.memory_space<vmem>>, vector<8x2xf32>
        %cst_54 = arith.constant dense<0.000000e+00> : vector<2x2xf32>
        %62 = tpu.matmul %60, %61, %cst_54 {dimension_numbers = #tpu.dot_dimension_numbers<[1], [0], [0], [1], [0, 0, 1, 1], [], []>} : vector<2x8xf32>, vector<8x2xf32>, vector<2x2xf32> -> vector<2x2xf32>
        %c0_55 = arith.constant 0 : index
        %c0_56 = arith.constant 0 : index
        %63 = vector.load %arg4[%c0_55, %c0_56] : memref<1x2xf32, #tpu.memory_space<vmem>>, vector<1x2xf32>
        %64 = vector.broadcast %63 : vector<1x2xf32> to vector<2x2xf32>
        %65 = arith.addf %62, %64 : vector<2x2xf32>
        %cst_57 = arith.constant 0.000000e+00 : f32
        %66 = vector.broadcast %cst_57 : f32 to vector<2x2xf32>
        %67 = arith.maximumf %65, %66 : vector<2x2xf32>
        %c0_58 = arith.constant 0 : index
        %c0_59 = arith.constant 0 : index
        %68 = vector.load %arg5[%c0_58, %c0_59] : memref<2x16xf32, #tpu.memory_space<vmem>>, vector<2x16xf32>
        %cst_60 = arith.constant dense<0.000000e+00> : vector<2x16xf32>
        %69 = tpu.matmul %67, %68, %cst_60 {dimension_numbers = #tpu.dot_dimension_numbers<[1], [0], [0], [1], [0, 0, 1, 1], [], []>} : vector<2x2xf32>, vector<2x16xf32>, vector<2x16xf32> -> vector<2x16xf32>
        %c0_61 = arith.constant 0 : index
        %c0_62 = arith.constant 0 : index
        %70 = vector.load %arg6[%c0_61, %c0_62] : memref<1x16xf32, #tpu.memory_space<vmem>>, vector<1x16xf32>
        %71 = vector.broadcast %70 : vector<1x16xf32> to vector<2x16xf32>
        %72 = arith.addf %69, %71 : vector<2x16xf32>
        %73 = vector.extract_strided_slice %72 {offsets = [0, 0], sizes = [2, 8], strides = [1, 1]} : vector<2x16xf32> to vector<2x8xf32>
        %74 = vector.extract_strided_slice %72 {offsets = [0, 8], sizes = [2, 8], strides = [1, 1]} : vector<2x16xf32> to vector<2x8xf32>
        %75 = arith.maximumf %73, %74 : vector<2x8xf32>
        %76 = arith.subf %73, %75 : vector<2x8xf32>
        %77 = math.exp %76 : vector<2x8xf32>
        %78 = arith.subf %74, %75 : vector<2x8xf32>
        %79 = math.exp %78 : vector<2x8xf32>
        %80 = arith.addf %77, %79 : vector<2x8xf32>
        %81 = tpu.reciprocal %80 {approx = true} : vector<2x8xf32> -> vector<2x8xf32>
        %82 = arith.mulf %80, %81 : vector<2x8xf32>
        %cst_63 = arith.constant 2.000000e+00 : f32
        %83 = vector.broadcast %cst_63 : f32 to vector<2x8xf32>
        %84 = arith.subf %83, %82 : vector<2x8xf32>
        %85 = arith.mulf %81, %84 : vector<2x8xf32>
        %86 = arith.mulf %77, %85 : vector<2x8xf32>
        %87 = arith.mulf %79, %85 : vector<2x8xf32>
        %88 = vector.shape_cast %86 : vector<2x8xf32> to vector<2x8x1xf32>
        %c0_64 = arith.constant 0 : index
        %c0_65 = arith.constant 0 : index
        %c0_66 = arith.constant 0 : index
        %c0_67 = arith.constant 0 : index
        %89 = vector.load %arg12[%c0_64, %c0_65, %c0_66, %c0_67] : memref<2x2x8x1xf32, #tpu.memory_space<vmem>>, vector<1x2x8x1xf32>
        %90 = vector.shape_cast %89 : vector<1x2x8x1xf32> to vector<2x8x1xf32>
        %91 = vector.shape_cast %88 : vector<2x8x1xf32> to vector<1x2x8x1xf32>
        tpu.vector_store %arg12[%c0_64, %c0_65, %c0_66, %c0_67], %91 {strides = array<i32>} : memref<2x2x8x1xf32, #tpu.memory_space<vmem>>, vector<1x2x8x1xf32>,
        %92 = vector.shape_cast %87 : vector<2x8xf32> to vector<2x8x1xf32>
        %c1_68 = arith.constant 1 : index
        %c0_69 = arith.constant 0 : index
        %c0_70 = arith.constant 0 : index
        %c0_71 = arith.constant 0 : index
        %93 = vector.load %arg12[%c1_68, %c0_69, %c0_70, %c0_71] : memref<2x2x8x1xf32, #tpu.memory_space<vmem>>, vector<1x2x8x1xf32>
        %94 = vector.shape_cast %93 : vector<1x2x8x1xf32> to vector<2x8x1xf32>
        %95 = vector.shape_cast %92 : vector<2x8x1xf32> to vector<1x2x8x1xf32>
        tpu.vector_store %arg12[%c1_68, %c0_69, %c0_70, %c0_71], %95 {strides = array<i32>} : memref<2x2x8x1xf32, #tpu.memory_space<vmem>>, vector<1x2x8x1xf32>,
        %c0_72 = arith.constant 0 : index
        %c0_73 = arith.constant 0 : index
        %c0_74 = arith.constant 0 : index
        %96 = vector.load %arg10[%c0_72, %c0_73, %c0_74] : memref<2x2x8xf32, #tpu.memory_space<vmem>>, vector<1x2x8xf32>
        %97 = vector.shape_cast %96 : vector<1x2x8xf32> to vector<2x8xf32>
        %98 = arith.mulf %86, %97 : vector<2x8xf32>
        %c1_75 = arith.constant 1 : index
        %c0_76 = arith.constant 0 : index
        %c0_77 = arith.constant 0 : index
        %99 = vector.load %arg10[%c1_75, %c0_76, %c0_77] : memref<2x2x8xf32, #tpu.memory_space<vmem>>, vector<1x2x8xf32>
        %100 = vector.shape_cast %99 : vector<1x2x8xf32> to vector<2x8xf32>
        %101 = arith.mulf %87, %100 : vector<2x8xf32>
        %102 = arith.addf %98, %101 : vector<2x8xf32>
        %cst_78 = arith.constant 1.000000e+00 : f32
        %103 = vector.broadcast %cst_78 : f32 to vector<2x8xf32>
        %104 = arith.mulf %103, %86 : vector<2x8xf32>
        %105 = arith.mulf %104, %86 : vector<2x8xf32>
        %c0_79 = arith.constant 0 : index
        %c0_80 = arith.constant 0 : index
        %c0_81 = arith.constant 0 : index
        %106 = vector.load %arg11[%c0_79, %c0_80, %c0_81] : memref<3x2x8xf32, #tpu.memory_space<vmem>>, vector<1x2x8xf32>
        %107 = vector.shape_cast %106 : vector<1x2x8xf32> to vector<2x8xf32>
        %108 = arith.mulf %105, %107 : vector<2x8xf32>
        %cst_82 = arith.constant 2.000000e+00 : f32
        %109 = vector.broadcast %cst_82 : f32 to vector<2x8xf32>
        %110 = arith.mulf %109, %86 : vector<2x8xf32>
        %111 = arith.mulf %110, %87 : vector<2x8xf32>
        %c1_83 = arith.constant 1 : index
        %c0_84 = arith.constant 0 : index
        %c0_85 = arith.constant 0 : index
        %112 = vector.load %arg11[%c1_83, %c0_84, %c0_85] : memref<3x2x8xf32, #tpu.memory_space<vmem>>, vector<1x2x8xf32>
        %113 = vector.shape_cast %112 : vector<1x2x8xf32> to vector<2x8xf32>
        %114 = arith.mulf %111, %113 : vector<2x8xf32>
        %115 = arith.addf %108, %114 : vector<2x8xf32>
        %cst_86 = arith.constant 1.000000e+00 : f32
        %116 = vector.broadcast %cst_86 : f32 to vector<2x8xf32>
        %117 = arith.mulf %116, %87 : vector<2x8xf32>
        %118 = arith.mulf %117, %87 : vector<2x8xf32>
        %c2_87 = arith.constant 2 : index
        %c0_88 = arith.constant 0 : index
        %c0_89 = arith.constant 0 : index
        %119 = vector.load %arg11[%c2_87, %c0_88, %c0_89] : memref<3x2x8xf32, #tpu.memory_space<vmem>>, vector<1x2x8xf32>
        %120 = vector.shape_cast %119 : vector<1x2x8xf32> to vector<2x8xf32>
        %121 = arith.mulf %118, %120 : vector<2x8xf32>
        %122 = arith.addf %115, %121 : vector<2x8xf32>
        %cst_90 = arith.constant dense<0.000000e+00> : vector<8xf32>
        %123 = vector.multi_reduction <add>, %102, %cst_90 [0] : vector<2x8xf32> to vector<8xf32>
        %124 = vector.shape_cast %123 : vector<8xf32> to vector<1x8xf32>
        %cst_91 = arith.constant 0.001953125 : f32
        %125 = vector.broadcast %cst_91 : f32 to vector<1x8xf32>
        %126 = arith.mulf %124, %125 : vector<1x8xf32>
        %cst_92 = arith.constant dense<0.000000e+00> : vector<8xf32>
        %127 = vector.multi_reduction <add>, %122, %cst_92 [0] : vector<2x8xf32> to vector<8xf32>
        %128 = vector.shape_cast %127 : vector<8xf32> to vector<1x8xf32>
        %cst_93 = arith.constant 0.001953125 : f32
        %129 = vector.broadcast %cst_93 : f32 to vector<1x8xf32>
        %130 = arith.mulf %128, %129 : vector<1x8xf32>
        %131 = arith.mulf %126, %126 : vector<1x8xf32>
        %132 = arith.subf %130, %131 : vector<1x8xf32>
        %cst_94 = arith.constant 0.000000e+00 : f32
        %133 = vector.broadcast %cst_94 : f32 to vector<1x8xf32>
        %134 = arith.maximumf %132, %133 : vector<1x8xf32>
        %c0_95 = arith.constant 0 : index
        %c0_96 = arith.constant 0 : index
        %135 = vector.load %arg7[%c0_95, %c0_96] : memref<1x8xf32, #tpu.memory_space<vmem>>, vector<1x8xf32>
        %cst_97 = arith.constant 9.99999974E-6 : f32
        %136 = vector.broadcast %cst_97 : f32 to vector<1x8xf32>
        %137 = arith.addf %134, %136 : vector<1x8xf32>
        %138 = math.rsqrt %137 : vector<1x8xf32>
        %139 = arith.mulf %135, %138 : vector<1x8xf32>
        %140 = vector.shape_cast %139 : vector<1x8xf32> to vector<1x8x1xf32>
        %c0_98 = arith.constant 0 : index
        %c0_99 = arith.constant 0 : index
        %c0_100 = arith.constant 0 : index
        %141 = vector.load %arg13[%c0_98, %c0_99, %c0_100] : memref<1x8x1xf32, #tpu.memory_space<vmem>>, vector<1x8x1xf32>
        tpu.vector_store %arg13[%c0_98, %c0_99, %c0_100], %140 {strides = array<i32>} : memref<1x8x1xf32, #tpu.memory_space<vmem>>, vector<1x8x1xf32>,
        %c0_101 = arith.constant 0 : index
        %c0_102 = arith.constant 0 : index
        %142 = vector.load %arg8[%c0_101, %c0_102] : memref<1x8xf32, #tpu.memory_space<vmem>>, vector<1x8xf32>
        %143 = arith.mulf %126, %139 : vector<1x8xf32>
        %144 = arith.subf %142, %143 : vector<1x8xf32>
        %145 = vector.shape_cast %144 : vector<1x8xf32> to vector<1x8x1xf32>
        %c0_103 = arith.constant 0 : index
        %c0_104 = arith.constant 0 : index
        %c0_105 = arith.constant 0 : index
        %146 = vector.load %arg14[%c0_103, %c0_104, %c0_105] : memref<1x8x1xf32, #tpu.memory_space<vmem>>, vector<1x8x1xf32>
        tpu.vector_store %arg14[%c0_103, %c0_104, %c0_105], %145 {strides = array<i32>} : memref<1x8x1xf32, #tpu.memory_space<vmem>>, vector<1x8x1xf32>,
      } else {
      }
    } else {
    }
    %c1_i32 = arith.constant 1 : i32
    %3 = arith.cmpi eq, %arg0, %c1_i32 : i32
    %4 = arith.extui %3 : i1 to i32
    %c0_i32_1 = arith.constant 0 : i32
    %5 = arith.cmpi ne, %4, %c0_i32_1 : i32
    scf.if %5 {
      %c0 = arith.constant 0 : index
      %c0_2 = arith.constant 0 : index
      %c0_3 = arith.constant 0 : index
      %c0_4 = arith.constant 0 : index
      %6 = vector.load %arg2[%c0, %c0_2, %c0_3, %c0_4] : memref<2x2x8x256xf32, #tpu.memory_space<vmem>>, vector<1x2x8x256xf32>
      %7 = vector.shape_cast %6 : vector<1x2x8x256xf32> to vector<2x8x256xf32>
      %c0_5 = arith.constant 0 : index
      %c0_6 = arith.constant 0 : index
      %c0_7 = arith.constant 0 : index
      %c0_8 = arith.constant 0 : index
      %8 = vector.load %arg12[%c0_5, %c0_6, %c0_7, %c0_8] : memref<2x2x8x1xf32, #tpu.memory_space<vmem>>, vector<1x2x8x1xf32>
      %9 = vector.shape_cast %8 : vector<1x2x8x1xf32> to vector<2x8x1xf32>
      %10 = vector.broadcast %9 : vector<2x8x1xf32> to vector<2x8x256xf32>
      %11 = arith.mulf %7, %10 : vector<2x8x256xf32>
      %c1 = arith.constant 1 : index
      %c0_9 = arith.constant 0 : index
      %c0_10 = arith.constant 0 : index
      %c0_11 = arith.constant 0 : index
      %12 = vector.load %arg2[%c1, %c0_9, %c0_10, %c0_11] : memref<2x2x8x256xf32, #tpu.memory_space<vmem>>, vector<1x2x8x256xf32>
      %13 = vector.shape_cast %12 : vector<1x2x8x256xf32> to vector<2x8x256xf32>
      %c1_12 = arith.constant 1 : index
      %c0_13 = arith.constant 0 : index
      %c0_14 = arith.constant 0 : index
      %c0_15 = arith.constant 0 : index
      %14 = vector.load %arg12[%c1_12, %c0_13, %c0_14, %c0_15] : memref<2x2x8x1xf32, #tpu.memory_space<vmem>>, vector<1x2x8x1xf32>
      %15 = vector.shape_cast %14 : vector<1x2x8x1xf32> to vector<2x8x1xf32>
      %16 = vector.broadcast %15 : vector<2x8x1xf32> to vector<2x8x256xf32>
      %17 = arith.mulf %13, %16 : vector<2x8x256xf32>
      %18 = arith.addf %11, %17 : vector<2x8x256xf32>
      %c0_16 = arith.constant 0 : index
      %c0_17 = arith.constant 0 : index
      %c0_18 = arith.constant 0 : index
      %19 = vector.load %arg13[%c0_16, %c0_17, %c0_18] : memref<1x8x1xf32, #tpu.memory_space<vmem>>, vector<1x8x1xf32>
      %20 = vector.broadcast %19 : vector<1x8x1xf32> to vector<2x8x256xf32>
      %21 = arith.mulf %18, %20 : vector<2x8x256xf32>
      %c0_19 = arith.constant 0 : index
      %c0_20 = arith.constant 0 : index
      %c0_21 = arith.constant 0 : index
      %22 = vector.load %arg14[%c0_19, %c0_20, %c0_21] : memref<1x8x1xf32, #tpu.memory_space<vmem>>, vector<1x8x1xf32>
      %23 = vector.broadcast %22 : vector<1x8x1xf32> to vector<2x8x256xf32>
      %24 = arith.addf %21, %23 : vector<2x8x256xf32>
      %c0_22 = arith.constant 0 : index
      %c0_23 = arith.constant 0 : index
      %c0_24 = arith.constant 0 : index
      %25 = vector.load %arg9[%c0_22, %c0_23, %c0_24] : memref<2x8x256xf32, #tpu.memory_space<vmem>>, vector<2x8x256xf32>
      tpu.vector_store %arg9[%c0_22, %c0_23, %c0_24], %24 {strides = array<i32>} : memref<2x8x256xf32, #tpu.memory_space<vmem>>, vector<2x8x256xf32>,
    } else {
    }
    return
  }
  func.func @transform_0(%arg0: i32, %arg1: i32) -> (i32, i32, i32, i32) {
    %c0_i32 = arith.constant 0 : i32
    %c0_i32_0 = arith.constant 0 : i32
    %c0_i32_1 = arith.constant 0 : i32
    %c0_i32_2 = arith.constant 0 : i32
    return %c0_i32, %c0_i32_0, %c0_i32_1, %arg1 : i32, i32, i32, i32
  }
  func.func @transform_1(%arg0: i32, %arg1: i32) -> (i32, i32) {
    %c0_i32 = arith.constant 0 : i32
    %c0_i32_0 = arith.constant 0 : i32
    %c0_i32_1 = arith.constant 0 : i32
    return %c0_i32, %c0_i32_0 : i32, i32
  }
  func.func @transform_2(%arg0: i32, %arg1: i32) -> (i32, i32) {
    %c0_i32 = arith.constant 0 : i32
    %c0_i32_0 = arith.constant 0 : i32
    %c0_i32_1 = arith.constant 0 : i32
    return %c0_i32, %c0_i32_0 : i32, i32
  }
  func.func @transform_3(%arg0: i32, %arg1: i32) -> (i32, i32) {
    %c0_i32 = arith.constant 0 : i32
    %c0_i32_0 = arith.constant 0 : i32
    %c0_i32_1 = arith.constant 0 : i32
    return %c0_i32, %c0_i32_0 : i32, i32
  }
  func.func @transform_4(%arg0: i32, %arg1: i32) -> (i32, i32) {
    %c0_i32 = arith.constant 0 : i32
    %c0_i32_0 = arith.constant 0 : i32
    %c0_i32_1 = arith.constant 0 : i32
    return %c0_i32, %c0_i32_0 : i32, i32
  }
  func.func @transform_5(%arg0: i32, %arg1: i32) -> (i32, i32) {
    %c0_i32 = arith.constant 0 : i32
    %c0_i32_0 = arith.constant 0 : i32
    %c0_i32_1 = arith.constant 0 : i32
    return %c0_i32, %c0_i32_0 : i32, i32
  }
  func.func @transform_6(%arg0: i32, %arg1: i32) -> (i32, i32) {
    %c0_i32 = arith.constant 0 : i32
    %c0_i32_0 = arith.constant 0 : i32
    %c0_i32_1 = arith.constant 0 : i32
    return %c0_i32, %c0_i32_0 : i32, i32
  }
  func.func @transform_7(%arg0: i32, %arg1: i32) -> (i32, i32, i32) {
    %0 = arith.muli %arg1, %arg0 : i32
    %c0_i32 = arith.constant 0 : i32
    %c0_i32_0 = arith.constant 0 : i32
    %c0_i32_1 = arith.constant 0 : i32
    return %c0_i32, %c0_i32_0, %0 : i32, i32, i32
  }
}

</mosaic_0001>

<llo_original>
// kernel: tpu_custom_call.1
$region0: #{tpu_custom_call.1}
  #allocation0 [shape = 'u32[]', space=smem, size = 0x4, offset = 0x4, fixed_abs, tag = 'smem constant byte address 0x4 - core index']
  #allocation1 [shape = 'u32[72,128]{1,0:T(1,128)}', space=vmem, size = 0x9000, scoped, tag = 'internal scratch']
  #allocation2 [shape = 'f32[2,2,8]{2,1,0:T(2,128)}', space=vmem, size = 0x800, scoped, tag = 'scratch operand']
  #allocation3 [shape = 'f32[3,2,8]{2,1,0:T(2,128)}', space=vmem, size = 0xc00, scoped, tag = 'scratch operand']
  #allocation4 [shape = 'f32[2,2,8,1]{3,2,1,0:T(8,128)}', space=vmem, size = 0x4000, scoped, tag = 'scratch operand']
  #allocation5 [shape = 'f32[1,8,1]{2,1,0:T(8,128)}', space=vmem, size = 0x1000, scoped, tag = 'scratch operand']
  #allocation6 [shape = 'f32[1,8,1]{2,1,0:T(8,128)}', space=vmem, size = 0x1000, scoped, tag = 'scratch operand']
  %s0 = inlined_call_operand.hbm [shape: f32[2,2,8,256], index: 0, kind: input, shape index: {}]
  %s1 = inlined_call_operand.vmem [shape: f32[8,2], index: 1, kind: input, shape index: {}]
  %s2 = inlined_call_operand.vmem [shape: f32[1,2], index: 2, kind: input, shape index: {}]
  %s3 = inlined_call_operand.vmem [shape: f32[2,16], index: 3, kind: input, shape index: {}]
  %s4 = inlined_call_operand.vmem [shape: f32[1,16], index: 4, kind: input, shape index: {}]
  %s5 = inlined_call_operand.vmem [shape: f32[1,8], index: 5, kind: input, shape index: {}]
  %s6 = inlined_call_operand.vmem [shape: f32[1,8], index: 6, kind: input, shape index: {}]
  %s7 = inlined_call_operand.hbm [shape: f32[2,8,256], index: 7, kind: output, shape index: {}]
  %s8 = sld [smem:[#allocation0]]
  $region81: #{tpu_custom_call.1} parent=0
    _
  %s10 = ssub.s32 1, %s8
  %s11 = scalar_select 0, %s10, %s8
  $region1: #{tpu_custom_call.1} parent=0
    #allocation7 [shape = 'u8[32768]{0}', space=vmem, size = 0x8000, scoped, tag = 'input window, operand 0, single buffered']
    #allocation8 [shape = 's32[2]{0}', space=sflag, size = 0x8, scoped, tag = 'scoped memory for tpu_custom_call.1']
    #allocation9 [shape = 's32[2]{0}', space=sflag, size = 0x8, scoped, tag = 'scoped memory for tpu_custom_call.1']
    #allocation10 [shape = 'u8[32768]{0}', space=vmem, size = 0x8000, scoped, tag = 'output window, operand 0']
    %12 = vsyncpa [#allocation8], 0
    %13 = vsyncpa [#allocation9], 0
    %s14 = scalar_lea.sflag [#allocation9], 1
    %15 = vsyncpa %s14, 0
    loop: start=0, step=1, limit=4
    $region2: #{tpu_custom_call.1} parent=1 // loop_pre_header
      _
    $region3: #{tpu_custom_call.1} parent=1 // loop_header
      %s17 = sphi 0, %s21
      %p18 = scmp.ge.s32.totalorder %s17, 4
      %s24 = sphi 0, %s36
      %s25 = sphi 0, %s32
      %s26 = sphi 0, %s24
      %s27 = sphi 0, %s25
      %s28 = sphi 0, %s26
      %s29 = sphi 0, %s27
      %s39 = sphi 0, %s41
      %s42 = sphi 0, %s39
      %s43 = sphi 0, %s42
      %s59 = sphi 0, %s43
      %s63 = sphi 0, %s63
      %s65 = sphi 0, %s63
      %s66 = sphi 0, %s65
      %s80 = sphi 0, %s66
      %s84 = sphi 0, %s84
      %s86 = sphi 0, %s84
      %s87 = sphi 0, %s86
      %s101 = sphi 0, %s87
      %s105 = sphi 0, %s105
      %s107 = sphi 0, %s105
      %s108 = sphi 0, %s107
      %s122 = sphi 0, %s108
      %s126 = sphi 0, %s126
      %s128 = sphi 0, %s126
      %s129 = sphi 0, %s128
      %s143 = sphi 0, %s129
      %s147 = sphi 0, %s147
      %s149 = sphi 0, %s147
      %s150 = sphi 0, %s149
      %s164 = sphi 0, %s150
      %s168 = sphi 0, %s168
      %s170 = sphi 0, %s168
      %s171 = sphi 0, %s170
      %s185 = sphi 0, %s171
      %s193 = sphi 0, %s195
      %s196 = sphi 0, %s193
      %s197 = sphi 0, %s196
      %s213 = sphi 0, %s197
    $region4: #{tpu_custom_call.1} parent=1 // loop_header_branch
      %20 = sbr.rel (%p18) target = $region8
    $region5: #{tpu_custom_call.1} parent=1 // loop_body
      %s22 = ssub.s32 %s17, 1
      %s23 = ssub.s32 %s17, 2
      %s30 = sadd.s32 1, %s25
      %p31 = scmp.ge.s32.totalorder %s30, 1
      %s32 = scalar_select %p31, 0, %s30
      %s33 = sadd.s32 1, %s24
      %s34 = scalar_select %p31, %s33, %s24
      %p35 = scmp.ge.s32.totalorder %s34, 2
      %s36 = scalar_select %p35, 0, %s34
      %s37 = ssub.s32 %s25, %s32
      %p38 = scmp.eq.s32.totalorder %s37, 0
      %s40 = sadd.s32 %s39, 1
      %s41 = scalar_select %p38, %s39, %s40
      %p44 = pneg %p38
      %p45 = scmp.eq.s32.totalorder %s17, 1
      %p46 = por %p44, %p45
      %p47 = scmp.ne.s32.totalorder %s39, %s42
      %p48 = scmp.eq.s32.totalorder %s17, 0
      %p49 = por %p47, %p48
      %p50 = scmp.ne.s32.totalorder %s39, %s42
      %p51 = scmp.eq.s32.totalorder %s22, 1
      %p52 = por %p50, %p51
      %p53 = scmp.ne.s32.totalorder %s42, %s43
      %p54 = scmp.eq.s32.totalorder %s22, 0
      %p55 = por %p53, %p54
      %p56 = scmp.ne.s32.totalorder %s42, %s43
      %p57 = scmp.eq.s32.totalorder %s23, 1
      %p58 = por %p56, %p57
      %p60 = scmp.ne.s32.totalorder %s43, %s59
      %p61 = scmp.eq.s32.totalorder %s23, 0
      %p62 = por %p60, %p61
      %s64 = sadd.s32 %s63, 1
      %p67 = scmp.eq.s32.totalorder %s17, 1
      %p68 = scmp.ne.s32.totalorder %s63, %s65
      %p69 = scmp.eq.s32.totalorder %s17, 0
      %p70 = por %p68, %p69
      %p71 = scmp.ne.s32.totalorder %s63, %s65
      %p72 = scmp.eq.s32.totalorder %s22, 1
      %p73 = por %p71, %p72
      %p74 = scmp.ne.s32.totalorder %s65, %s66
      %p75 = scmp.eq.s32.totalorder %s22, 0
      %p76 = por %p74, %p75
      %p77 = scmp.ne.s32.totalorder %s65, %s66
      %p78 = scmp.eq.s32.totalorder %s23, 1
      %p79 = por %p77, %p78
      %p81 = scmp.ne.s32.totalorder %s66, %s80
      %p82 = scmp.eq.s32.totalorder %s23, 0
      %p83 = por %p81, %p82
      %s85 = sadd.s32 %s84, 1
      %p88 = scmp.eq.s32.totalorder %s17, 1
      %p89 = scmp.ne.s32.totalorder %s84, %s86
      %p90 = scmp.eq.s32.totalorder %s17, 0
      %p91 = por %p89, %p90
      %p92 = scmp.ne.s32.totalorder %s84, %s86
      %p93 = scmp.eq.s32.totalorder %s22, 1
      %p94 = por %p92, %p93
      %p95 = scmp.ne.s32.totalorder %s86, %s87
      %p96 = scmp.eq.s32.totalorder %s22, 0
      %p97 = por %p95, %p96
      %p98 = scmp.ne.s32.totalorder %s86, %s87
      %p99 = scmp.eq.s32.totalorder %s23, 1
      %p100 = por %p98, %p99
      %p102 = scmp.ne.s32.totalorder %s87, %s101
      %p103 = scmp.eq.s32.totalorder %s23, 0
      %p104 = por %p102, %p103
      %s106 = sadd.s32 %s105, 1
      %p109 = scmp.eq.s32.totalorder %s17, 1
      %p110 = scmp.ne.s32.totalorder %s105, %s107
      %p111 = scmp.eq.s32.totalorder %s17, 0
      %p112 = por %p110, %p111
      %p113 = scmp.ne.s32.totalorder %s105, %s107
      %p114 = scmp.eq.s32.totalorder %s22, 1
      %p115 = por %p113, %p114
      %p116 = scmp.ne.s32.totalorder %s107, %s108
      %p117 = scmp.eq.s32.totalorder %s22, 0
      %p118 = por %p116, %p117
      %p119 = scmp.ne.s32.totalorder %s107, %s108
      %p120 = scmp.eq.s32.totalorder %s23, 1
      %p121 = por %p119, %p120
      %p123 = scmp.ne.s32.totalorder %s108, %s122
      %p124 = scmp.eq.s32.totalorder %s23, 0
      %p125 = por %p123, %p124
      %s127 = sadd.s32 %s126, 1
      %p130 = scmp.eq.s32.totalorder %s17, 1
      %p131 = scmp.ne.s32.totalorder %s126, %s128
      %p132 = scmp.eq.s32.totalorder %s17, 0
      %p133 = por %p131, %p132
      %p134 = scmp.ne.s32.totalorder %s126, %s128
      %p135 = scmp.eq.s32.totalorder %s22, 1
      %p136 = por %p134, %p135
      %p137 = scmp.ne.s32.totalorder %s128, %s129
      %p138 = scmp.eq.s32.totalorder %s22, 0
      %p139 = por %p137, %p138
      %p140 = scmp.ne.s32.totalorder %s128, %s129
      %p141 = scmp.eq.s32.totalorder %s23, 1
      %p142 = por %p140, %p141
      %p144 = scmp.ne.s32.totalorder %s129, %s143
      %p145 = scmp.eq.s32.totalorder %s23, 0
      %p146 = por %p144, %p145
      %s148 = sadd.s32 %s147, 1
      %p151 = scmp.eq.s32.totalorder %s17, 1
      %p152 = scmp.ne.s32.totalorder %s147, %s149
      %p153 = scmp.eq.s32.totalorder %s17, 0
      %p154 = por %p152, %p153
      %p155 = scmp.ne.s32.totalorder %s147, %s149
      %p156 = scmp.eq.s32.totalorder %s22, 1
      %p157 = por %p155, %p156
      %p158 = scmp.ne.s32.totalorder %s149, %s150
      %p159 = scmp.eq.s32.totalorder %s22, 0
      %p160 = por %p158, %p159
      %p161 = scmp.ne.s32.totalorder %s149, %s150
      %p162 = scmp.eq.s32.totalorder %s23, 1
      %p163 = por %p161, %p162
      %p165 = scmp.ne.s32.totalorder %s150, %s164
      %p166 = scmp.eq.s32.totalorder %s23, 0
      %p167 = por %p165, %p166
      %s169 = sadd.s32 %s168, 1
      %p172 = scmp.eq.s32.totalorder %s17, 1
      %p173 = scmp.ne.s32.totalorder %s168, %s170
      %p174 = scmp.eq.s32.totalorder %s17, 0
      %p175 = por %p173, %p174
      %p176 = scmp.ne.s32.totalorder %s168, %s170
      %p177 = scmp.eq.s32.totalorder %s22, 1
      %p178 = por %p176, %p177
      %p179 = scmp.ne.s32.totalorder %s170, %s171
      %p180 = scmp.eq.s32.totalorder %s22, 0
      %p181 = por %p179, %p180
      %p182 = scmp.ne.s32.totalorder %s170, %s171
      %p183 = scmp.eq.s32.totalorder %s23, 1
      %p184 = por %p182, %p183
      %p186 = scmp.ne.s32.totalorder %s171, %s185
      %p187 = scmp.eq.s32.totalorder %s23, 0
      %p188 = por %p186, %p187
      %s189 = smul.u32 %s25, %s24
      %s190 = smul.u32 %s32, %s36
      %s191 = ssub.s32 %s189, %s190
      %p192 = scmp.eq.s32.totalorder %s191, 0
      %s194 = sadd.s32 %s193, 1
      %s195 = scalar_select %p192, %s193, %s194
      %p198 = pneg %p192
      %p199 = scmp.eq.s32.totalorder %s17, 1
      %p200 = por %p198, %p199
      %p201 = scmp.ne.s32.totalorder %s193, %s196
      %p202 = scmp.eq.s32.totalorder %s17, 0
      %p203 = por %p201, %p202
      %p204 = scmp.ne.s32.totalorder %s193, %s196
      %p205 = scmp.eq.s32.totalorder %s22, 1
      %p206 = por %p204, %p205
      %p207 = scmp.ne.s32.totalorder %s196, %s197
      %p208 = scmp.eq.s32.totalorder %s22, 0
      %p209 = por %p207, %p208
      %p210 = scmp.ne.s32.totalorder %s196, %s197
      %p211 = scmp.eq.s32.totalorder %s23, 1
      %p212 = por %p210, %p211
      %p214 = scmp.ne.s32.totalorder %s197, %s213
      %p215 = scmp.eq.s32.totalorder %s23, 0
      %p216 = por %p214, %p215
      %p217 = scmp.le.s32.totalorder 1, %s17
      %p218 = scmp.lt.s32.totalorder %s17, 3
      %p219 = pnand %p217, %p218
      %p220 = pneg %p219
      // Predicated region
      $region9: #{tpu_custom_call.1} parent=5 // pred_check
        _
      $region10: #{tpu_custom_call.1} parent=5 // pred_check_branch
        %222 = sbr.rel (%p219) target = $region12
      $region11: #{tpu_custom_call.1} parent=5 // pred_region
        %s223 = ssub.s32 %s17, 1
        // Predicated region
        $region13: #{tpu_custom_call.1} parent=11 // pred_check
          %p224 = pneg %p55
        $region14: #{tpu_custom_call.1} parent=11 // pred_check_branch
          %226 = sbr.rel (%p224) target = $region16
        $region15: #{tpu_custom_call.1} parent=11 // pred_region
          %s227 = smul.u32 2, %s27
          %229 = vsyncadd [#allocation8], 0
          %s230 = smul.addr %s227, 8
          %s231 = scalar_lea.hbm %s0, %s230
          %s232 = sshll.u32 %s231, 4
          %s233 = int_to_ptr.hbm [resolvable:$true] %s232
          %s234 = sshll.u32 [#allocation7], 4
          %s235 = int_to_ptr.vmem [resolvable:$true] %s234
          %240 = dma.hbm_to_vmem [thread:$0]  %s233, 1024, %s235, [#allocation8], 256, 256, 16
        $region16: #{tpu_custom_call.1} parent=11 // pred_fallthru
          _
        // Predicated region
        $region17: #{tpu_custom_call.1} parent=11 // pred_check
          %p241 = pneg %p76
        $region18: #{tpu_custom_call.1} parent=11 // pred_check_branch
          %243 = sbr.rel (%p241) target = $region20
        $region19: #{tpu_custom_call.1} parent=11 // pred_region
          _
        $region20: #{tpu_custom_call.1} parent=11 // pred_fallthru
          _
        // Predicated region
        $region21: #{tpu_custom_call.1} parent=11 // pred_check
          %p244 = pneg %p97
        $region22: #{tpu_custom_call.1} parent=11 // pred_check_branch
          %246 = sbr.rel (%p244) target = $region24
        $region23: #{tpu_custom_call.1} parent=11 // pred_region
          _
        $region24: #{tpu_custom_call.1} parent=11 // pred_fallthru
          _
        // Predicated region
        $region25: #{tpu_custom_call.1} parent=11 // pred_check
          %p247 = pneg %p118
        $region26: #{tpu_custom_call.1} parent=11 // pred_check_branch
          %249 = sbr.rel (%p247) target = $region28
        $region27: #{tpu_custom_call.1} parent=11 // pred_region
          _
        $region28: #{tpu_custom_call.1} parent=11 // pred_fallthru
          _
        // Predicated region
        $region29: #{tpu_custom_call.1} parent=11 // pred_check
          %p250 = pneg %p139
        $region30: #{tpu_custom_call.1} parent=11 // pred_check_branch
          %252 = sbr.rel (%p250) target = $region32
        $region31: #{tpu_custom_call.1} parent=11 // pred_region
          _
        $region32: #{tpu_custom_call.1} parent=11 // pred_fallthru
          _
        // Predicated region
        $region33: #{tpu_custom_call.1} parent=11 // pred_check
          %p253 = pneg %p160
        $region34: #{tpu_custom_call.1} parent=11 // pred_check_branch
          %255 = sbr.rel (%p253) target = $region36
        $region35: #{tpu_custom_call.1} parent=11 // pred_region
          _
        $region36: #{tpu_custom_call.1} parent=11 // pred_fallthru
          _
        // Predicated region
        $region37: #{tpu_custom_call.1} parent=11 // pred_check
          %p256 = pneg %p181
        $region38: #{tpu_custom_call.1} parent=11 // pred_check_branch
          %258 = sbr.rel (%p256) target = $region40
        $region39: #{tpu_custom_call.1} parent=11 // pred_region
          _
        $region40: #{tpu_custom_call.1} parent=11 // pred_fallthru
          _
      $region12: #{tpu_custom_call.1} parent=5 // pred_fallthru
        _
      %p259 = scmp.lt.s32.totalorder %s17, 2
      // Predicated region
      $region41: #{tpu_custom_call.1} parent=5 // pred_check
        %p260 = pneg %p259
      $region42: #{tpu_custom_call.1} parent=5 // pred_check_branch
        %262 = sbr.rel (%p260) target = $region44
      $region43: #{tpu_custom_call.1} parent=5 // pred_region
        _
      $region44: #{tpu_custom_call.1} parent=5 // pred_fallthru
        _
      %p263 = scmp.le.s32.totalorder 1, %s17
      %p264 = scmp.lt.s32.totalorder %s17, 3
      %p265 = pnand %p263, %p264
      %p266 = pneg %p265
      // Predicated region
      $region45: #{tpu_custom_call.1} parent=5 // pred_check
        _
      $region46: #{tpu_custom_call.1} parent=5 // pred_check_branch
        %268 = sbr.rel (%p265) target = $region48
      $region47: #{tpu_custom_call.1} parent=5 // pred_region
        %s269 = ssub.s32 %s17, 1
        // Predicated region
        $region49: #{tpu_custom_call.1} parent=47 // pred_check
          %p270 = pneg %p55
        $region50: #{tpu_custom_call.1} parent=47 // pred_check_branch
          %272 = sbr.rel (%p270) target = $region52
        $region51: #{tpu_custom_call.1} parent=47 // pred_region
          %274 = dma.done [#allocation8], 1024
        $region52: #{tpu_custom_call.1} parent=47 // pred_fallthru
          _
        %p275 = pneg %p55
        %p276 = pneg %p52
        %p277 = pneg %p76
        %p278 = pneg %p73
        %p279 = pneg %p97
        %p280 = pneg %p94
        %p281 = pneg %p118
        %p282 = pneg %p115
        %p283 = pneg %p139
        %p284 = pneg %p136
        %p285 = pneg %p160
        %p286 = pneg %p157
        %p287 = pneg %p181
        %p288 = pneg %p178
        %p289 = pneg %p209
        %p290 = pneg %p206
        %s291 = sand.u32 %s196, 1
        %s292 = scalar_lea.sflag [#allocation9], %s291
        %s293 = sand.u32 %s196, 1
        %s294 = smul.addr %s293, 32
        %s295 = scalar_lea.vmem [#allocation10], %s294
        %s296 = smul.u32 2, %s27
        %s297 = smul.u32 %s27, %s26
        %s298 = smul.u32 2, %s297
        %p299 = scmp.eq.s32.totalorder %s26, 0
        // Predicated region
        $region53: #{tpu_custom_call.1} parent=47 // pred_check
          %p300 = pneg %p299
        $region54: #{tpu_custom_call.1} parent=47 // pred_check_branch
          %302 = sbr.rel (%p300) target = $region56
        $region55: #{tpu_custom_call.1} parent=47 // pred_region
          %p303 = scmp.eq.s32.totalorder %s27, 0
          // Predicated region
          $region57: #{tpu_custom_call.1} parent=55 // pred_check
            %p304 = pneg %p303
          $region58: #{tpu_custom_call.1} parent=55 // pred_check_branch
            %306 = sbr.rel (%p304) target = $region60
          $region59: #{tpu_custom_call.1} parent=55 // pred_region
            %vm307 = vcmask 58368
            %308 = vst.msk [vmem:[#allocation2] sm:$0x3] %vm307, 0.0
            %309 = vst.msk [vmem:[#allocation2 + $0x2] sm:$0x3] %vm307, 0.0
            %310 = vst.msk [vmem:[#allocation3] sm:$0x3] %vm307, 0.0
            %311 = vst.msk [vmem:[#allocation3 + $0x2] sm:$0x3] %vm307, 0.0
            %312 = vst.msk [vmem:[#allocation3 + $0x4] sm:$0x3] %vm307, 0.0
          $region60: #{tpu_custom_call.1} parent=55 // pred_fallthru
            _
          %v313 = vld [vmem:[#allocation7] sm:$0xff]
          %v314 = vld [vmem:[#allocation7 + $0x8] sm:$0xff]
          %v315 = vld [vmem:[#allocation7 + $0x10] sm:$0xff]
          %v316 = vld [vmem:[#allocation7 + $0x18] sm:$0xff]
          %s317 = scalar_lea.vmem [#allocation7], 32
          %v318 = vld [vmem:[%s317] sm:$0xff]
          %v319 = vld [vmem:[%s317 + $0x8] sm:$0xff]
          %v320 = vld [vmem:[%s317 + $0x10] sm:$0xff]
          %v321 = vld [vmem:[%s317 + $0x18] sm:$0xff]
          %v322 = vld [vmem:[#allocation2] sm:$0x3]
          %v323 = vadd.f32 %v313, %v314
          %324 = vadd.xlane.f32.xlu0 %v323
          %v325 = vpop.xlane.xlu0 %324
          %v326 = vadd.f32 %v315, %v316
          %327 = vadd.xlane.f32.xlu0 %v326
          %v328 = vpop.xlane.xlu0 %327
          %v331 = vlaneseq
          %v332 = vand.u32 %v331, 127
          %v333 = vperm.slane %v325, %v332
          %v334 = vperm.slane %v328, %v332
          %vm335 = vcmask 1041409
          %v336 = vsel %vm335, %v334, %v333
          %v338 = vadd.f32 %v322, %v336
          %vm339 = vcmask 58368
          %340 = vst.msk [vmem:[#allocation2] sm:$0x3] %vm339, %v338
          %s341 = scalar_lea.vmem [#allocation2], 2
          %v342 = vld [vmem:[%s341] sm:$0x3]
          %v343 = vadd.f32 %v318, %v319
          %344 = vadd.xlane.f32.xlu0 %v343
          %v345 = vpop.xlane.xlu0 %344
          %v346 = vadd.f32 %v320, %v321
          %347 = vadd.xlane.f32.xlu0 %v346
          %v348 = vpop.xlane.xlu0 %347
          %v351 = vperm.slane %v345, %v332
          %v352 = vperm.slane %v348, %v332
          %v353 = vsel %vm335, %v352, %v351
          %v355 = vadd.f32 %v342, %v353
          %356 = vst.msk [vmem:[%s341] sm:$0x3] %vm339, %v355
          %v357 = vld [vmem:[#allocation3] sm:$0x3]
          %v358 = vmul.f32 %v313, %v313
          %v359 = vmul.f32 %v314, %v314
          %v360 = vmul.f32 %v315, %v315
          %v361 = vmul.f32 %v316, %v316
          %v362 = vadd.f32 %v358, %v359
          %363 = vadd.xlane.f32.xlu0 %v362
          %v364 = vpop.xlane.xlu0 %363
          %v365 = vadd.f32 %v360, %v361
          %366 = vadd.xlane.f32.xlu0 %v365
          %v367 = vpop.xlane.xlu0 %366
          %v370 = vperm.slane %v364, %v332
          %v371 = vperm.slane %v367, %v332
          %v372 = vsel %vm335, %v371, %v370
          %v374 = vadd.f32 %v357, %v372
          %375 = vst.msk [vmem:[#allocation3] sm:$0x3] %vm339, %v374
          %s376 = scalar_lea.vmem [#allocation3], 2
          %v377 = vld [vmem:[%s376] sm:$0x3]
          %v378 = vmul.f32 %v313, %v318
          %v379 = vmul.f32 %v314, %v319
          %v380 = vmul.f32 %v315, %v320
          %v381 = vmul.f32 %v316, %v321
          %v382 = vadd.f32 %v378, %v379
          %383 = vadd.xlane.f32.xlu0 %v382
          %v384 = vpop.xlane.xlu0 %383
          %v385 = vadd.f32 %v380, %v381
          %386 = vadd.xlane.f32.xlu0 %v385
          %v387 = vpop.xlane.xlu0 %386
          %v390 = vperm.slane %v384, %v332
          %v391 = vperm.slane %v387, %v332
          %v392 = vsel %vm335, %v391, %v390
          %v394 = vadd.f32 %v377, %v392
          %395 = vst.msk [vmem:[%s376] sm:$0x3] %vm339, %v394
          %s396 = scalar_lea.vmem [#allocation3], 4
          %v397 = vld [vmem:[%s396] sm:$0x3]
          %v398 = vmul.f32 %v318, %v318
          %v399 = vmul.f32 %v319, %v319
          %v400 = vmul.f32 %v320, %v320
          %v401 = vmul.f32 %v321, %v321
          %v402 = vadd.f32 %v398, %v399
          %403 = vadd.xlane.f32.xlu0 %v402
          %v404 = vpop.xlane.xlu0 %403
          %v405 = vadd.f32 %v400, %v401
          %406 = vadd.xlane.f32.xlu0 %v405
          %v407 = vpop.xlane.xlu0 %406
          %v410 = vperm.slane %v404, %v332
          %v411 = vperm.slane %v407, %v332
          %v412 = vsel %vm335, %v411, %v410
          %v414 = vadd.f32 %v397, %v412
          %415 = vst.msk [vmem:[%s396] sm:$0x3] %vm339, %v414
          // Predicated region
          $region61: #{tpu_custom_call.1} parent=55 // pred_check
            %p416 = pneg %p303
          $region62: #{tpu_custom_call.1} parent=55 // pred_check_branch
            %418 = sbr.rel (%p416) target = $region64
          $region63: #{tpu_custom_call.1} parent=55 // pred_region
            %v419 = vld [vmem:[#allocation2] sm:$0x3]
            %v420 = vld [vmem:[%s341] sm:$0x3]
            %v421 = vadd.f32 %v419, %v420
            %v422 = vmul.f32 %v421, 0.00390625
            %v423 = vld [vmem:[%s1] sm:$0xff]
            %v424 = vld [vmem:[%s2] sm:$0x1]
            %v426 = vperm.slane %v424, 0
            %vm428 = vcmask 64512
            %v430 = vsel %vm428, %v422, 0
            %432 = vmatpush.msra.mxu0 0.0
            %433 = vmatpush.msra.mxu0 0.0
            %434 = vmatpush.msra.mxu0 0.0
            %435 = vmatpush.msra.mxu0 0.0
            %436 = vmatpush.msra.mxu0 0.0
            %437 = vmatpush.msra.mxu0 0.0
            %438 = vmatpush.msra.mxu0 0.0
            %439 = vmatpush.msra.mxu0 0.0
            %440 = vmatpush.msra.mxu0 0.0
            %441 = vmatpush.msra.mxu0 0.0
            %442 = vmatpush.msra.mxu0 0.0
            %443 = vmatpush.msra.mxu0 0.0
            %444 = vmatpush.msra.mxu0 0.0
            %445 = vmatpush.msra.mxu0 0.0
            %446 = vmatpush.msra.mxu0 0.0
            %447 = vmatpush.msra.mxu0 %v423
            %448 = vmatmul.f32.gmra.mxu0 %v430
            %v449 = vpop.f32.mrf.mxu0
            %v450 = vadd.f32 %v426, %v449
            %451 = vdwg.mxu0
            %v452 = vmax.f32 %v450, 0.0
            %v453 = vld [vmem:[%s3] sm:$0x3]
            %v454 = vld [vmem:[%s4] sm:$0x1]
            %v456 = vperm.slane %v454, 0
            %vm458 = vcmask 15360
            %v460 = vsel %vm458, %v452, 0
            %vm462 = vcmask 1041408
            %v464 = vsel %vm462, %v453, 0
            %466 = vmatpush.msra.mxu0 0.0
            %467 = vmatpush.msra.mxu0 0.0
            %468 = vmatpush.msra.mxu0 0.0
            %469 = vmatpush.msra.mxu0 0.0
            %470 = vmatpush.msra.mxu0 0.0
            %471 = vmatpush.msra.mxu0 0.0
            %472 = vmatpush.msra.mxu0 0.0
            %473 = vmatpush.msra.mxu0 0.0
            %474 = vmatpush.msra.mxu0 0.0
            %475 = vmatpush.msra.mxu0 0.0
            %476 = vmatpush.msra.mxu0 0.0
            %477 = vmatpush.msra.mxu0 0.0
            %478 = vmatpush.msra.mxu0 0.0
            %479 = vmatpush.msra.mxu0 0.0
            %480 = vmatpush.msra.mxu0 0.0
            %481 = vmatpush.msra.mxu0 %v464
            %482 = vmatmul.f32.gmra.mxu0 %v460
            %v483 = vpop.f32.mrf.mxu0
            %v484 = vadd.f32 %v456, %v483
            %485 = vdwg.mxu0
            %487 = vrot.lane.b32.xlu0 %v484, 120
            %v488 = vpop.permute.xlu0 %487
            %v490 = vmax.f32 %v484, %v488
            %v491 = vsub.f32 %v484, %v490
            %v492 = vmul.f32 %v491, 1.442695
            %v493 = vpow.pop %v492
            %495 = vrot.lane.b32.xlu0 %v490, 8
            %v496 = vpop.permute.xlu0 %495
            %v498 = vsub.f32 %v484, %v496
            %v499 = vmul.f32 %v498, 1.442695
            %v500 = vpow.pop %v499
            %502 = vrot.lane.b32.xlu0 %v500, 120
            %v503 = vpop.permute.xlu0 %502
            %v505 = vadd.f32 %v493, %v503
            %v506 = vrcp.pop %v505
            %v507 = vmul.f32 %v505, %v506
            %v508 = vsub.f32 2.0, %v507
            %v509 = vmul.f32 %v506, %v508
            %v510 = vmul.f32 %v493, %v509
            %512 = vrot.lane.b32.xlu0 %v509, 8
            %v513 = vpop.permute.xlu0 %512
            %v515 = vmul.f32 %v500, %v513
            %v516 = vperm.slane %v510, 0
            %v517 = vlaneseq
            %v518 = vshrl.u32 %v517, 7
            %520 = vset.pattern.permute.xlu0 %v518
            %521 = vperm.xlu0 %520, %v516
            %v522 = vpop.permute.xlu0 %521
            %v523 = vperm.slane %v510, 1
            %v524 = vlaneseq
            %v525 = vshrl.u32 %v524, 7
            %527 = vset.pattern.permute.xlu0 %v525
            %528 = vperm.xlu0 %527, %v523
            %v529 = vpop.permute.xlu0 %528
            %vm530 = vcmask 7168
            %531 = vst.msk [vmem:[#allocation4] sm:$0xff] %vm530, %v522
            %532 = vst.msk [vmem:[#allocation4 + $0x8] sm:$0xff] %vm530, %v529
            %v533 = vperm.slane %v515, 0
            %v534 = vlaneseq
            %v535 = vshrl.u32 %v534, 7
            %v536 = vadd.s32 %v535, 8
            %537 = vset.pattern.permute.xlu0 %v536
            %538 = vperm.xlu0 %537, %v533
            %v539 = vpop.permute.xlu0 %538
            %v540 = vperm.slane %v515, 1
            %v541 = vlaneseq
            %v542 = vshrl.u32 %v541, 7
            %v543 = vadd.s32 %v542, 8
            %544 = vset.pattern.permute.xlu0 %v543
            %545 = vperm.xlu0 %544, %v540
            %v546 = vpop.permute.xlu0 %545
            %s547 = scalar_lea.vmem [#allocation4], 16
            %548 = vst.msk [vmem:[%s547] sm:$0xff] %vm530, %v539
            %549 = vst.msk [vmem:[%s547 + $0x8] sm:$0xff] %vm530, %v546
            %v550 = vld [vmem:[#allocation2] sm:$0x3]
            %v551 = vmul.f32 %v510, %v550
            %v552 = vld [vmem:[%s341] sm:$0x3]
            %554 = vrot.lane.b32.xlu0 %v552, 8
            %v555 = vpop.permute.xlu0 %554
            %v557 = vmul.f32 %v515, %v555
            %559 = vrot.lane.b32.xlu0 %v557, 120
            %v560 = vpop.permute.xlu0 %559
            %v562 = vadd.f32 %v551, %v560
            %v563 = vmul.f32 %v510, %v510
            %v564 = vld [vmem:[#allocation3] sm:$0x3]
            %v565 = vmul.f32 %v563, %v564
            %v566 = vmul.f32 %v510, 2.0
            %568 = vrot.lane.b32.xlu0 %v515, 120
            %v569 = vpop.permute.xlu0 %568
            %v571 = vmul.f32 %v566, %v569
            %v572 = vld [vmem:[%s376] sm:$0x3]
            %v573 = vmul.f32 %v571, %v572
            %v574 = vadd.f32 %v565, %v573
            %v575 = vmul.f32 %v515, %v515
            %v576 = vld [vmem:[%s396] sm:$0x3]
            %578 = vrot.lane.b32.xlu0 %v576, 8
            %v579 = vpop.permute.xlu0 %578
            %v581 = vmul.f32 %v575, %v579
            %583 = vrot.lane.b32.xlu0 %v581, 120
            %v584 = vpop.permute.xlu0 %583
            %v586 = vadd.f32 %v574, %v584
            %v587 = vsel %vm339, %v562, 0.0
            %v588 = vrot.slane %v587, 4
            %v589 = vadd.f32 %v587, %v588
            %v590 = vrot.slane %v589, 2
            %v591 = vadd.f32 %v589, %v590
            %v592 = vrot.slane %v591, 1
            %v593 = vadd.f32 %v591, %v592
            %v594 = vmul.f32 %v593, 0.001953125
            %v595 = vsel %vm339, %v586, 0.0
            %v596 = vrot.slane %v595, 4
            %v597 = vadd.f32 %v595, %v596
            %v598 = vrot.slane %v597, 2
            %v599 = vadd.f32 %v597, %v598
            %v600 = vrot.slane %v599, 1
            %v601 = vadd.f32 %v599, %v600
            %v602 = vmul.f32 %v601, 0.001953125
            %v603 = vmul.f32 %v594, %v594
            %v604 = vsub.f32 %v602, %v603
            %v605 = vmax.f32 %v604, 0.0
            %v606 = vld [vmem:[%s5] sm:$0x1]
            %v607 = vadd.f32 %v605, 1e-05
            %v608 = vrsqrt.pop %v607
            %v609 = vmul.f32 %v608, %v607
            %v610 = vmul.f32 %v609, %v608
            %v611 = vmul.f32 0.5, %v610
            %v612 = vsub.f32 1.5, %v611
            %v613 = vmul.f32 %v608, %v612
            %vm614 = vweird.f32 %v607
            %vm615 = vweird.f32 %v608
            %vm616 = vmor %vm614, %vm615
            %v617 = vsel %vm616, %v608, %v613
            %v618 = vmul.f32 %v606, %v617
            %v619 = vperm.slane %v618, 0
            %v620 = vlaneseq
            %v621 = vshrl.u32 %v620, 7
            %623 = vset.pattern.permute.xlu0 %v621
            %624 = vperm.xlu0 %623, %v619
            %v625 = vpop.permute.xlu0 %624
            %626 = vst.msk [vmem:[#allocation5] sm:$0xff] %vm530, %v625
            %v627 = vld [vmem:[%s6] sm:$0x1]
            %v628 = vmul.f32 %v594, %v618
            %v629 = vsub.f32 %v627, %v628
            %v630 = vperm.slane %v629, 0
            %v631 = vlaneseq
            %v632 = vshrl.u32 %v631, 7
            %634 = vset.pattern.permute.xlu0 %v632
            %635 = vperm.xlu0 %634, %v630
            %v636 = vpop.permute.xlu0 %635
            %637 = vst.msk [vmem:[#allocation6] sm:$0xff] %vm530, %v636
          $region64: #{tpu_custom_call.1} parent=55 // pred_fallthru
            _
        $region56: #{tpu_custom_call.1} parent=47 // pred_fallthru
          _
        %p638 = scmp.eq.s32.totalorder %s26, 1
        // Predicated region
        $region65: #{tpu_custom_call.1} parent=47 // pred_check
          %p639 = pneg %p638
        $region66: #{tpu_custom_call.1} parent=47 // pred_check_branch
          %641 = sbr.rel (%p639) target = $region68
        $region67: #{tpu_custom_call.1} parent=47 // pred_region
          %v642 = vld [vmem:[#allocation7] sm:$0xff]
          %v643 = vld [vmem:[#allocation7 + $0x8] sm:$0xff]
          %v644 = vld [vmem:[#allocation7 + $0x10] sm:$0xff]
          %v645 = vld [vmem:[#allocation7 + $0x18] sm:$0xff]
          %v646 = vld [vmem:[#allocation4] sm:$0xff]
          %v647 = vld [vmem:[#allocation4 + $0x8] sm:$0xff]
          %649 = vset.pattern.permute.xlu0 0
          %650 = vperm.xlu0 %649, %v646
          %v651 = vpop.permute.xlu0 %650
          %654 = vset.pattern.permute.xlu0 0
          %655 = vperm.xlu0 %654, %v647
          %v656 = vpop.permute.xlu0 %655
          %v658 = vmul.f32 %v642, %v651
          %v659 = vmul.f32 %v643, %v651
          %v660 = vmul.f32 %v644, %v656
          %v661 = vmul.f32 %v645, %v656
          %s662 = scalar_lea.vmem [#allocation7], 32
          %v663 = vld [vmem:[%s662] sm:$0xff]
          %v664 = vld [vmem:[%s662 + $0x8] sm:$0xff]
          %v665 = vld [vmem:[%s662 + $0x10] sm:$0xff]
          %v666 = vld [vmem:[%s662 + $0x18] sm:$0xff]
          %s667 = scalar_lea.vmem [#allocation4], 16
          %v668 = vld [vmem:[%s667] sm:$0xff]
          %v669 = vld [vmem:[%s667 + $0x8] sm:$0xff]
          %671 = vset.pattern.permute.xlu0 0
          %672 = vperm.xlu0 %671, %v668
          %v673 = vpop.permute.xlu0 %672
          %676 = vset.pattern.permute.xlu0 0
          %677 = vperm.xlu0 %676, %v669
          %v678 = vpop.permute.xlu0 %677
          %v680 = vmul.f32 %v663, %v673
          %v681 = vmul.f32 %v664, %v673
          %v682 = vmul.f32 %v665, %v678
          %v683 = vmul.f32 %v666, %v678
          %v684 = vadd.f32 %v658, %v680
          %v685 = vadd.f32 %v659, %v681
          %v686 = vadd.f32 %v660, %v682
          %v687 = vadd.f32 %v661, %v683
          %v688 = vld [vmem:[#allocation5] sm:$0xff]
          %690 = vset.pattern.permute.xlu0 0
          %691 = vperm.xlu0 %690, %v688
          %v692 = vpop.permute.xlu0 %691
          %v694 = vmul.f32 %v684, %v692
          %v695 = vmul.f32 %v685, %v692
          %v696 = vmul.f32 %v686, %v692
          %v697 = vmul.f32 %v687, %v692
          %v698 = vld [vmem:[#allocation6] sm:$0xff]
          %700 = vset.pattern.permute.xlu0 0
          %701 = vperm.xlu0 %700, %v698
          %v702 = vpop.permute.xlu0 %701
          %v704 = vadd.f32 %v694, %v702
          %v705 = vadd.f32 %v695, %v702
          %v706 = vadd.f32 %v696, %v702
          %v707 = vadd.f32 %v697, %v702
          %708 = vst [vmem:[%s295] sm:$0xff] %v704
          %709 = vst [vmem:[%s295 + $0x8] sm:$0xff] %v705
          %710 = vst [vmem:[%s295 + $0x10] sm:$0xff] %v706
          %711 = vst [vmem:[%s295 + $0x18] sm:$0xff] %v707
        $region68: #{tpu_custom_call.1} parent=47 // pred_fallthru
          _
        %s712 = sand.u32 %s196, 1
        %s713 = scalar_lea.sflag [#allocation9], %s712
        %s714 = sand.u32 %s196, 1
        %s715 = smul.addr %s714, 32
        %s716 = scalar_lea.vmem [#allocation10], %s715
        // Predicated region
        $region69: #{tpu_custom_call.1} parent=47 // pred_check
          %p717 = pneg %p206
        $region70: #{tpu_custom_call.1} parent=47 // pred_check_branch
          %719 = sbr.rel (%p717) target = $region72
        $region71: #{tpu_custom_call.1} parent=47 // pred_region
          %s720 = smul.u32 %s27, %s26
          %s721 = smul.u32 2, %s720
          %723 = vsyncadd %s713, 0
          %s724 = smul.addr %s721, 8
          %s725 = scalar_lea.hbm %s7, %s724
          %s726 = sshll.u32 %s716, 4
          %s727 = int_to_ptr.vmem [resolvable:$true] %s726
          %s728 = sshll.u32 %s725, 4
          %s729 = int_to_ptr.hbm [resolvable:$true] %s728
          %734 = dma.vmem_to_hbm [thread:$0]  %s727, 512, %s729, %s713, 256, 256, 16
        $region72: #{tpu_custom_call.1} parent=47 // pred_fallthru
          _
      $region48: #{tpu_custom_call.1} parent=5 // pred_fallthru
        _
      %p735 = scmp.le.s32.totalorder 2, %s17
      // Predicated region
      $region73: #{tpu_custom_call.1} parent=5 // pred_check
        %p736 = pneg %p735
      $region74: #{tpu_custom_call.1} parent=5 // pred_check_branch
        %738 = sbr.rel (%p736) target = $region76
      $region75: #{tpu_custom_call.1} parent=5 // pred_region
        %s739 = ssub.s32 %s17, 2
        // Predicated region
        $region77: #{tpu_custom_call.1} parent=75 // pred_check
          %p740 = pneg %p212
        $region78: #{tpu_custom_call.1} parent=75 // pred_check_branch
          %742 = sbr.rel (%p740) target = $region80
        $region79: #{tpu_custom_call.1} parent=75 // pred_region
          %s743 = sand.u32 %s197, 1
          %s744 = scalar_lea.sflag [#allocation9], %s743
          %s745 = sand.u32 %s197, 1
          %s746 = smul.addr %s745, 32
          %s747 = scalar_lea.vmem [#allocation10], %s746
          %749 = dma.done %s744, 512
        $region80: #{tpu_custom_call.1} parent=75 // pred_fallthru
          _
      $region76: #{tpu_custom_call.1} parent=5 // pred_fallthru
        _
    $region6: #{tpu_custom_call.1} parent=1 // loop_footer
      %s21 = sadd.s32 1, %s17
    $region7: #{tpu_custom_call.1} parent=1 // loop_footer_branch
      %16 = sbr.rel target = $region3
    $region8: #{tpu_custom_call.1} parent=1 // loop_exit
      _
    %750 = vsyncpa [#allocation8], 1
    %s751 = scalar_lea.sflag [#allocation8], 1
    %752 = vsyncpa %s751, 1
    %753 = vsyncpa [#allocation9], 1
    %s754 = scalar_lea.sflag [#allocation9], 1
    %755 = vsyncpa %s754, 1

</llo_original>
